<compile_context>
chip_gen: v7x
topology: tpu7x:2x2x1
jax: 0.10.0
libtpu: 0.0.40
codegen_flags: <defaults>
</compile_context>

<pallas_src>
import functools

import jax
import jax.numpy as jnp
from jax.experimental import pallas as pl
from jax.experimental.pallas import tpu as pltpu

EPS = 1e-5
_TILE_B_MAX = 512  # rows per grid step; comfortably within v7x's 64 MiB VMEM budget


def _round_up(n, m):
    return ((n + m - 1) // m) * m


def _resident(rows, cols):
    """BlockSpec for a parameter that stays resident in VMEM across the whole grid."""
    return pl.BlockSpec((rows, cols), lambda i: (0, 0))


# ---------------- Pass 1: BatchNorm1d(32) statistics over h1_pre = x @ W1 ----------------
def _stats1_kernel(x_ref, w1_ref, g1_ref, be1_ref,
                   scale1_ref, shift1_ref,
                   sum_ref, sumsq_ref, *, true_b, tile_b):
    i = pl.program_id(0)

    @pl.when(i == 0)
    def _():
        sum_ref[...] = jnp.zeros_like(sum_ref)
        sumsq_ref[...] = jnp.zeros_like(sumsq_ref)

    x = x_ref[...].astype(jnp.float32)                       # matches .float()
    # b1 dropped: a bias added before BatchNorm is exactly cancelled by the mean subtraction.
    h = jnp.dot(x, w1_ref[...], preferred_element_type=jnp.float32)

    row = jax.lax.broadcasted_iota(jnp.int32, h.shape, 0) + i * tile_b
    h = jnp.where(row < true_b, h, 0.0)                      # mask padded rows

    sum_ref[...] += jnp.sum(h, axis=0, keepdims=True)
    sumsq_ref[...] += jnp.sum(h * h, axis=0, keepdims=True)

    @pl.when(i == pl.num_programs(0) - 1)
    def _():
        inv_b = 1.0 / true_b
        mean = sum_ref[...] * inv_b
        var = jnp.maximum(sumsq_ref[...] * inv_b - mean * mean, 0.0)   # biased var
        scale = g1_ref[...] * jax.lax.rsqrt(var + EPS)
        scale1_ref[...] = scale
        shift1_ref[...] = be1_ref[...] - mean * scale


# ---------------- Pass 2: BatchNorm1d(8) statistics over h2_pre ----------------
def _stats2_kernel(x_ref, w1_ref, s1_ref, t1_ref, w2_ref, g2_ref, be2_ref,
                   scale2_ref, shift2_ref,
                   sum_ref, sumsq_ref, *, true_b, tile_b):
    i = pl.program_id(0)

    @pl.when(i == 0)
    def _():
        sum_ref[...] = jnp.zeros_like(sum_ref)
        sumsq_ref[...] = jnp.zeros_like(sumsq_ref)

    x = x_ref[...].astype(jnp.float32)
    h1 = jnp.dot(x, w1_ref[...], preferred_element_type=jnp.float32)
    h1 = jnp.maximum(h1 * s1_ref[...] + t1_ref[...], 0.0)    # folded BN1 + ReLU
    h2 = jnp.dot(h1, w2_ref[...], preferred_element_type=jnp.float32)  # b2 dropped

    row = jax.lax.broadcasted_iota(jnp.int32, h2.shape, 0) + i * tile_b
    h2 = jnp.where(row < true_b, h2, 0.0)

    sum_ref[...] += jnp.sum(h2, axis=0, keepdims=True)
    sumsq_ref[...] += jnp.sum(h2 * h2, axis=0, keepdims=True)

    @pl.when(i == pl.num_programs(0) - 1)
    def _():
        inv_b = 1.0 / true_b
        mean = sum_ref[...] * inv_b
        var = jnp.maximum(sumsq_ref[...] * inv_b - mean * mean, 0.0)
        scale = g2_ref[...] * jax.lax.rsqrt(var + EPS)
        scale2_ref[...] = scale
        shift2_ref[...] = be2_ref[...] - mean * scale


# ---------------- Pass 3: apply (normalize -> ReLU -> normalize -> ReLU -> Linear3) ----------
def _apply_kernel(x_ref, w1_ref, s1_ref, t1_ref, w2_ref, s2_ref, t2_ref,
                  w3_ref, b3_ref, o_ref):
    x = x_ref[...].astype(jnp.float32)
    h1 = jnp.dot(x, w1_ref[...], preferred_element_type=jnp.float32)
    h1 = jnp.maximum(h1 * s1_ref[...] + t1_ref[...], 0.0)
    h2 = jnp.dot(h1, w2_ref[...], preferred_element_type=jnp.float32)
    h2 = jnp.maximum(h2 * s2_ref[...] + t2_ref[...], 0.0)
    o = jnp.dot(h2, w3_ref[...], preferred_element_type=jnp.float32) + b3_ref[...]
    o_ref[...] = o.astype(o_ref.dtype)


def stoa_forward(x, params, tile_b=None):
    """x: (B, state_size) float32/bfloat16; params: dict from init_params."""
    B, dim_in = x.shape
    h1 = params["w1"].shape[1]
    h2 = params["w2"].shape[1]
    dim_out = params["w3"].shape[1]

    if tile_b is None:
        tile_b = min(_TILE_B_MAX, _round_up(B, 8))
    b_pad = _round_up(B, tile_b)
    if b_pad != B:
        x = jnp.pad(x, ((0, b_pad - B), (0, 0)))
    num_tiles = b_pad // tile_b

    itemsize = jnp.dtype(x.dtype).itemsize
    # Explicit scoped-VMEM budget: double-buffered x/out tiles + activations + resident params.
    raw = (2 * tile_b * dim_in * itemsize
           + 2 * tile_b * dim_out * 4
           + 2 * tile_b * (h1 + h2) * 4
           + 2 * 4 * (dim_in * h1 + h1 * h2 + h2 * dim_out + 4 * (h1 + h2) + dim_out))
    vmem_bytes = min(max(int(1.5 * raw), 16 * 1024 * 1024), 32 * 1024 * 1024)

    x_spec = pl.BlockSpec((tile_b, dim_in), lambda i: (i, 0))
    mm_flops = 2 * b_pad * (dim_in * h1 + h1 * h2 + h2 * dim_out)
    x_bytes = b_pad * dim_in * itemsize
    param_bytes = 4 * (dim_in * h1 + h1 * h2 + h2 * dim_out + 4 * (h1 + h2) + dim_out)

    # ---- pass 1: BN1 stats (sequential reduction over batch tiles) ----
    scale1, shift1 = pl.pallas_call(
        functools.partial(_stats1_kernel, true_b=B, tile_b=tile_b),
        out_shape=(jax.ShapeDtypeStruct((1, h1), jnp.float32),
                   jax.ShapeDtypeStruct((1, h1), jnp.float32)),
        grid_spec=pltpu.PrefetchScalarGridSpec(
            num_scalar_prefetch=0,
            grid=(num_tiles,),
            in_specs=[x_spec,
                      _resident(dim_in, h1),
                      _resident(1, h1),
                      _resident(1, h1)],
            out_specs=[_resident(1, h1), _resident(1, h1)],
            scratch_shapes=[pltpu.VMEM((1, h1), jnp.float32),
                            pltpu.VMEM((1, h1), jnp.float32)]),
        compiler_params=pltpu.CompilerParams(
            dimension_semantics=("arbitrary",),
            vmem_limit_bytes=vmem_bytes),
        cost_estimate=pl.CostEstimate(
            flops=2 * b_pad * dim_in * h1 + 4 * b_pad * h1,
            transcendentals=h1,
            bytes_accessed=x_bytes + param_bytes + 8 * h1),
    )(x, params["w1"], params["g1"], params["be1"])

    # ---- pass 2: BN2 stats ----
    scale2, shift2 = pl.pallas_call(
        functools.partial(_stats2_kernel, true_b=B, tile_b=tile_b),
        out_shape=(jax.ShapeDtypeStruct((1, h2), jnp.float32),
                   jax.ShapeDtypeStruct((1, h2), jnp.float32)),
        grid_spec=pltpu.PrefetchScalarGridSpec(
            num_scalar_prefetch=0,
            grid=(num_tiles,),
            in_specs=[x_spec,
                      _resident(dim_in, h1),
                      _resident(1, h1), _resident(1, h1),
                      _resident(h1, h2),
                      _resident(1, h2), _resident(1, h2)],
            out_specs=[_resident(1, h2), _resident(1, h2)],
            scratch_shapes=[pltpu.VMEM((1, h2), jnp.float32),
                            pltpu.VMEM((1, h2), jnp.float32)]),
        compiler_params=pltpu.CompilerParams(
            dimension_semantics=("arbitrary",),
            vmem_limit_bytes=vmem_bytes),
        cost_estimate=pl.CostEstimate(
            flops=2 * b_pad * (dim_in * h1 + h1 * h2) + 4 * b_pad * (h1 + h2),
            transcendentals=h2,
            bytes_accessed=x_bytes + param_bytes + 8 * h2),
    )(x, params["w1"], scale1, shift1, params["w2"], params["g2"], params["be2"])

    # ---- pass 3: apply (batch axis is megacore-parallel; stats already global) ----
    out = pl.pallas_call(
        _apply_kernel,
        out_shape=jax.ShapeDtypeStruct((b_pad, dim_out), jnp.float32),
        grid_spec=pltpu.PrefetchScalarGridSpec(
            num_scalar_prefetch=0,
            grid=(num_tiles,),
            in_specs=[x_spec,
                      _resident(dim_in, h1), _resident(1, h1), _resident(1, h1),
                      _resident(h1, h2), _resident(1, h2), _resident(1, h2),
                      _resident(h2, dim_out), _resident(1, dim_out)],
            out_specs=pl.BlockSpec((tile_b, dim_out), lambda i: (i, 0))),
        compiler_params=pltpu.CompilerParams(
            dimension_semantics=("parallel",),
            vmem_limit_bytes=vmem_bytes),
        cost_estimate=pl.CostEstimate(
            flops=mm_flops + 4 * b_pad * (h1 + h2),
            transcendentals=0,
            bytes_accessed=x_bytes + param_bytes + b_pad * dim_out * 4),
    )(x, params["w1"], scale1, shift1, params["w2"], scale2, shift2,
      params["w3"], params["b3"])

    return out[:B] if b_pad != B else out


def init_params(key, state_size, action_size, h1=32, h2=8):
    """Deterministic synthetic parameters (PyTorch-style init, stored as (in, out))."""
    ks = jax.random.split(key, 6)

    def lin(kw, kb, fan_in, fan_out):
        bound = 1.0 / jnp.sqrt(fan_in)
        w = jax.random.uniform(kw, (fan_in, fan_out), jnp.float32, -bound, bound)
        b = jax.random.uniform(kb, (1, fan_out), jnp.float32, -bound, bound)
        return w, b

    w1, b1 = lin(ks[0], ks[1], state_size, h1)
    w2, b2 = lin(ks[2], ks[3], h1, h2)
    w3, b3 = lin(ks[4], ks[5], h2, action_size)
    return {
        "w1": w1, "b1": b1,
        "g1": jnp.ones((1, h1), jnp.float32), "be1": jnp.zeros((1, h1), jnp.float32),
        "w2": w2, "b2": b2,
        "g2": jnp.ones((1, h2), jnp.float32), "be2": jnp.zeros((1, h2), jnp.float32),
        "w3": w3, "b3": b3,
    }


def _reference_forward(x, p):
    """Pure-JAX reference with the full PyTorch math (biases included)."""
    def bn(h, g, be):
        m = jnp.mean(h, axis=0, keepdims=True)
        v = jnp.mean((h - m) ** 2, axis=0, keepdims=True)
        return (h - m) / jnp.sqrt(v + EPS) * g + be

    x = x.astype(jnp.float32)
    h = jnp.maximum(bn(x @ p["w1"] + p["b1"], p["g1"], p["be1"]), 0.0)
    h = jnp.maximum(bn(h @ p["w2"] + p["b2"], p["g2"], p["be2"]), 0.0)
    return h @ p["w3"] + p["b3"]


if __name__ == "__main__":
    key = jax.random.PRNGKey(0)
    k_x, k_p = jax.random.split(key)

    batch = 20          # not a multiple of the tile -> exercises padding + row masking
    state_size = 16
    action_size = 4

    x = jax.random.normal(k_x, (batch, state_size), jnp.float32)
    params = init_params(k_p, state_size, action_size)
    ref = _reference_forward(x, params)

    # Multi-tile path: tile_b=8 -> grid of 3 batch tiles, last tile partially masked.
    out_tiled = jax.block_until_ready(stoa_forward(x, params, tile_b=8))
    assert out_tiled.shape == (batch, action_size)
    assert jnp.allclose(out_tiled, ref, atol=1e-4, rtol=1e-4), "tiled mismatch vs reference"

    # Default (auto) tile path: single tile covering the whole (padded) batch.
    out_auto = jax.block_until_ready(stoa_forward(x, params))
    assert out_auto.shape == (batch, action_size)
    assert jnp.allclose(out_auto, ref, atol=1e-4, rtol=1e-4), "auto-tile mismatch vs reference"

    print("KERNEL_OK")
</pallas_src>

<mosaic_0001>
module attributes {stable_mosaic.version = 11 : i64} {
  func.func @_stats1_kernel(%arg0: i32, %arg1: memref<8x16xf32, #tpu.memory_space<vmem>>, %arg2: memref<16x32xf32, #tpu.memory_space<vmem>>, %arg3: memref<1x32xf32, #tpu.memory_space<vmem>>, %arg4: memref<1x32xf32, #tpu.memory_space<vmem>>, %arg5: memref<1x32xf32, #tpu.memory_space<vmem>>, %arg6: memref<1x32xf32, #tpu.memory_space<vmem>>, %arg7: memref<1x32xf32, #tpu.memory_space<vmem>>, %arg8: memref<1x32xf32, #tpu.memory_space<vmem>>) attributes {dimension_semantics = [#tpu.dimension_semantics<arbitrary>], iteration_bounds = array<i64: 3>, scalar_prefetch = 0 : i64, scratch_operands = 2 : i64, tpu.core_type = #tpu.core_type<tc>, window_params = [{transform_indices = @transform_0, window_bounds = array<i64: 8, 16>}, {pipeline_mode = #tpu.pipeline_mode<synchronous>, transform_indices = @transform_1, window_bounds = array<i64: 16, 32>}, {pipeline_mode = #tpu.pipeline_mode<synchronous>, transform_indices = @transform_2, window_bounds = array<i64: 1, 32>}, {pipeline_mode = #tpu.pipeline_mode<synchronous>, transform_indices = @transform_3, window_bounds = array<i64: 1, 32>}, {pipeline_mode = #tpu.pipeline_mode<synchronous>, transform_indices = @transform_4, window_bounds = array<i64: 1, 32>}, {pipeline_mode = #tpu.pipeline_mode<synchronous>, transform_indices = @transform_5, window_bounds = array<i64: 1, 32>}]} {
    %c0_i32 = arith.constant 0 : i32
    %0 = arith.cmpi eq, %arg0, %c0_i32 : i32
    %1 = arith.extui %0 : i1 to i32
    %c0_i32_0 = arith.constant 0 : i32
    %2 = arith.cmpi ne, %1, %c0_i32_0 : i32
    scf.if %2 {
      %cst_16 = arith.constant 0.000000e+00 : f32
      %28 = vector.broadcast %cst_16 : f32 to vector<1x32xf32>
      %c0_17 = arith.constant 0 : index
      %c0_18 = arith.constant 0 : index
      %29 = vector.load %arg7[%c0_17, %c0_18] : memref<1x32xf32, #tpu.memory_space<vmem>>, vector<1x32xf32>
      tpu.vector_store %arg7[%c0_17, %c0_18], %28 {strides = array<i32>} : memref<1x32xf32, #tpu.memory_space<vmem>>, vector<1x32xf32>,
      %cst_19 = arith.constant 0.000000e+00 : f32
      %30 = vector.broadcast %cst_19 : f32 to vector<1x32xf32>
      %c0_20 = arith.constant 0 : index
      %c0_21 = arith.constant 0 : index
      %31 = vector.load %arg8[%c0_20, %c0_21] : memref<1x32xf32, #tpu.memory_space<vmem>>, vector<1x32xf32>
      tpu.vector_store %arg8[%c0_20, %c0_21], %30 {strides = array<i32>} : memref<1x32xf32, #tpu.memory_space<vmem>>, vector<1x32xf32>,
    } else {
    }
    %c0 = arith.constant 0 : index
    %c0_1 = arith.constant 0 : index
    %3 = vector.load %arg1[%c0, %c0_1] : memref<8x16xf32, #tpu.memory_space<vmem>>, vector<8x16xf32>
    %c0_2 = arith.constant 0 : index
    %c0_3 = arith.constant 0 : index
    %4 = vector.load %arg2[%c0_2, %c0_3] : memref<16x32xf32, #tpu.memory_space<vmem>>, vector<16x32xf32>
    %cst = arith.constant dense<0.000000e+00> : vector<8x32xf32>
    %5 = tpu.matmul %3, %4, %cst {dimension_numbers = #tpu.dot_dimension_numbers<[1], [0], [0], [1], [0, 0, 1, 1], [], []>} : vector<8x16xf32>, vector<16x32xf32>, vector<8x32xf32> -> vector<8x32xf32>
    %6 = tpu.iota {dimensions = array<i32: 0>} : vector<8x32xi32>
    %c8_i32 = arith.constant 8 : i32
    %7 = arith.muli %arg0, %c8_i32 : i32
    %8 = vector.broadcast %7 : i32 to vector<8x32xi32>
    %9 = arith.addi %6, %8 : vector<8x32xi32>
    %c20_i32 = arith.constant 20 : i32
    %10 = vector.broadcast %c20_i32 : i32 to vector<8x32xi32>
    %11 = arith.cmpi slt, %9, %10 : vector<8x32xi32>
    %cst_4 = arith.constant 0.000000e+00 : f32
    %12 = vector.broadcast %cst_4 : f32 to vector<8x32xf32>
    %13 = arith.select %11, %5, %12 : vector<8x32xi1>, vector<8x32xf32>
    %c0_5 = arith.constant 0 : index
    %c0_6 = arith.constant 0 : index
    %14 = vector.load %arg7[%c0_5, %c0_6] : memref<1x32xf32, #tpu.memory_space<vmem>>, vector<1x32xf32>
    %cst_7 = arith.constant dense<0.000000e+00> : vector<32xf32>
    %15 = vector.multi_reduction <add>, %13, %cst_7 [0] : vector<8x32xf32> to vector<32xf32>
    %16 = vector.shape_cast %15 : vector<32xf32> to vector<1x32xf32>
    %17 = arith.addf %14, %16 : vector<1x32xf32>
    %c0_8 = arith.constant 0 : index
    %c0_9 = arith.constant 0 : index
    %18 = vector.load %arg7[%c0_8, %c0_9] : memref<1x32xf32, #tpu.memory_space<vmem>>, vector<1x32xf32>
    tpu.vector_store %arg7[%c0_8, %c0_9], %17 {strides = array<i32>} : memref<1x32xf32, #tpu.memory_space<vmem>>, vector<1x32xf32>,
    %c0_10 = arith.constant 0 : index
    %c0_11 = arith.constant 0 : index
    %19 = vector.load %arg8[%c0_10, %c0_11] : memref<1x32xf32, #tpu.memory_space<vmem>>, vector<1x32xf32>
    %20 = arith.mulf %13, %13 : vector<8x32xf32>
    %cst_12 = arith.constant dense<0.000000e+00> : vector<32xf32>
    %21 = vector.multi_reduction <add>, %20, %cst_12 [0] : vector<8x32xf32> to vector<32xf32>
    %22 = vector.shape_cast %21 : vector<32xf32> to vector<1x32xf32>
    %23 = arith.addf %19, %22 : vector<1x32xf32>
    %c0_13 = arith.constant 0 : index
    %c0_14 = arith.constant 0 : index
    %24 = vector.load %arg8[%c0_13, %c0_14] : memref<1x32xf32, #tpu.memory_space<vmem>>, vector<1x32xf32>
    tpu.vector_store %arg8[%c0_13, %c0_14], %23 {strides = array<i32>} : memref<1x32xf32, #tpu.memory_space<vmem>>, vector<1x32xf32>,
    %c2_i32 = arith.constant 2 : i32
    %25 = arith.cmpi eq, %arg0, %c2_i32 : i32
    %26 = arith.extui %25 : i1 to i32
    %c0_i32_15 = arith.constant 0 : i32
    %27 = arith.cmpi ne, %26, %c0_i32_15 : i32
    scf.if %27 {
      %c0_16 = arith.constant 0 : index
      %c0_17 = arith.constant 0 : index
      %28 = vector.load %arg7[%c0_16, %c0_17] : memref<1x32xf32, #tpu.memory_space<vmem>>, vector<1x32xf32>
      %cst_18 = arith.constant 5.000000e-02 : f32
      %29 = vector.broadcast %cst_18 : f32 to vector<1x32xf32>
      %30 = arith.mulf %28, %29 : vector<1x32xf32>
      %c0_19 = arith.constant 0 : index
      %c0_20 = arith.constant 0 : index
      %31 = vector.load %arg8[%c0_19, %c0_20] : memref<1x32xf32, #tpu.memory_space<vmem>>, vector<1x32xf32>
      %cst_21 = arith.constant 5.000000e-02 : f32
      %32 = vector.broadcast %cst_21 : f32 to vector<1x32xf32>
      %33 = arith.mulf %31, %32 : vector<1x32xf32>
      %34 = arith.mulf %30, %30 : vector<1x32xf32>
      %35 = arith.subf %33, %34 : vector<1x32xf32>
      %cst_22 = arith.constant 0.000000e+00 : f32
      %36 = vector.broadcast %cst_22 : f32 to vector<1x32xf32>
      %37 = arith.maximumf %35, %36 : vector<1x32xf32>
      %c0_23 = arith.constant 0 : index
      %c0_24 = arith.constant 0 : index
      %38 = vector.load %arg3[%c0_23, %c0_24] : memref<1x32xf32, #tpu.memory_space<vmem>>, vector<1x32xf32>
      %cst_25 = arith.constant 9.99999974E-6 : f32
      %39 = vector.broadcast %cst_25 : f32 to vector<1x32xf32>
      %40 = arith.addf %37, %39 : vector<1x32xf32>
      %41 = math.rsqrt %40 : vector<1x32xf32>
      %42 = arith.mulf %38, %41 : vector<1x32xf32>
      %c0_26 = arith.constant 0 : index
      %c0_27 = arith.constant 0 : index
      %43 = vector.load %arg5[%c0_26, %c0_27] : memref<1x32xf32, #tpu.memory_space<vmem>>, vector<1x32xf32>
      tpu.vector_store %arg5[%c0_26, %c0_27], %42 {strides = array<i32>} : memref<1x32xf32, #tpu.memory_space<vmem>>, vector<1x32xf32>,
      %c0_28 = arith.constant 0 : index
      %c0_29 = arith.constant 0 : index
      %44 = vector.load %arg4[%c0_28, %c0_29] : memref<1x32xf32, #tpu.memory_space<vmem>>, vector<1x32xf32>
      %45 = arith.mulf %30, %42 : vector<1x32xf32>
      %46 = arith.subf %44, %45 : vector<1x32xf32>
      %c0_30 = arith.constant 0 : index
      %c0_31 = arith.constant 0 : index
      %47 = vector.load %arg6[%c0_30, %c0_31] : memref<1x32xf32, #tpu.memory_space<vmem>>, vector<1x32xf32>
      tpu.vector_store %arg6[%c0_30, %c0_31], %46 {strides = array<i32>} : memref<1x32xf32, #tpu.memory_space<vmem>>, vector<1x32xf32>,
    } else {
    }
    return
  }
  func.func @transform_0(%arg0: i32) -> (i32, i32) {
    %c0_i32 = arith.constant 0 : i32
    %c0_i32_0 = arith.constant 0 : i32
    return %arg0, %c0_i32 : i32, i32
  }
  func.func @transform_1(%arg0: i32) -> (i32, i32) {
    %c0_i32 = arith.constant 0 : i32
    %c0_i32_0 = arith.constant 0 : i32
    %c0_i32_1 = arith.constant 0 : i32
    return %c0_i32, %c0_i32_0 : i32, i32
  }
  func.func @transform_2(%arg0: i32) -> (i32, i32) {
    %c0_i32 = arith.constant 0 : i32
    %c0_i32_0 = arith.constant 0 : i32
    %c0_i32_1 = arith.constant 0 : i32
    return %c0_i32, %c0_i32_0 : i32, i32
  }
  func.func @transform_3(%arg0: i32) -> (i32, i32) {
    %c0_i32 = arith.constant 0 : i32
    %c0_i32_0 = arith.constant 0 : i32
    %c0_i32_1 = arith.constant 0 : i32
    return %c0_i32, %c0_i32_0 : i32, i32
  }
  func.func @transform_4(%arg0: i32) -> (i32, i32) {
    %c0_i32 = arith.constant 0 : i32
    %c0_i32_0 = arith.constant 0 : i32
    %c0_i32_1 = arith.constant 0 : i32
    return %c0_i32, %c0_i32_0 : i32, i32
  }
  func.func @transform_5(%arg0: i32) -> (i32, i32) {
    %c0_i32 = arith.constant 0 : i32
    %c0_i32_0 = arith.constant 0 : i32
    %c0_i32_1 = arith.constant 0 : i32
    return %c0_i32, %c0_i32_0 : i32, i32
  }
}

</mosaic_0001>

<llo_original>
// kernel: tpu_custom_call.1
$region0: #{tpu_custom_call.1}
  #allocation0 [shape = 'u32[]', space=smem, size = 0x4, offset = 0x4, fixed_abs, tag = 'smem constant byte address 0x4 - core index']
  #allocation1 [shape = 'u32[144,128]{1,0:T(1,128)}', space=vmem, size = 0x12000, scoped, tag = 'internal scratch']
  #allocation2 [shape = 'f32[1,32]{1,0:T(1,128)}', space=vmem, size = 0x200, scoped, tag = 'scratch operand']
  #allocation3 [shape = 'f32[1,32]{1,0:T(1,128)}', space=vmem, size = 0x200, scoped, tag = 'scratch operand']
  %s0 = inlined_call_operand.vmem [shape: f32[24,16], index: 0, kind: input, shape index: {}]
  %s1 = inlined_call_operand.vmem [shape: f32[16,32], index: 1, kind: input, shape index: {}]
  %s2 = inlined_call_operand.vmem [shape: f32[1,32], index: 2, kind: input, shape index: {}]
  %s3 = inlined_call_operand.vmem [shape: f32[1,32], index: 3, kind: input, shape index: {}]
  %s4 = inlined_call_operand.hbm [shape: f32[1,32], index: 4, kind: output, shape index: {0}]
  %s5 = inlined_call_operand.hbm [shape: f32[1,32], index: 5, kind: output, shape index: {1}]
  %6 = xla_tuple %s4, %s5
  %s7 = sld [smem:[#allocation0]]
  $region65: #{tpu_custom_call.1} parent=0
    _
  %s9 = ssub.s32 1, %s7
  %s10 = scalar_select 0, %s9, %s7
  $region1: #{tpu_custom_call.1} parent=0
    #allocation4 [shape = 'u8[512]{0}', space=vmem, size = 0x400, scoped, tag = 'output window, operand 0, single buffered']
    #allocation5 [shape = 's32[2]{0}', space=sflag, size = 0x8, scoped, tag = 'scoped memory for tpu_custom_call.1']
    #allocation6 [shape = 'u8[512]{0}', space=vmem, size = 0x400, scoped, tag = 'output window, operand 1, single buffered']
    #allocation7 [shape = 's32[1]{0}', space=sflag, size = 0x4, scoped, tag = 'scoped memory for tpu_custom_call.1']
    %11 = vsyncpa [#allocation5], 0
    %12 = vsyncpa [#allocation7], 0
    loop: start=0, step=1, limit=5
    $region2: #{tpu_custom_call.1} parent=1 // loop_pre_header
      _
    $region3: #{tpu_custom_call.1} parent=1 // loop_header
      %s14 = sphi 0, %s18
      %p15 = scmp.ge.s32.totalorder %s14, 5
      %s24 = sphi 0, %s26
      %s27 = sphi 0, %s24
      %s28 = sphi 0, %s27
      %s44 = sphi 0, %s28
      %s48 = sphi 0, %s48
      %s50 = sphi 0, %s48
      %s51 = sphi 0, %s50
      %s65 = sphi 0, %s51
      %s69 = sphi 0, %s69
      %s71 = sphi 0, %s69
      %s72 = sphi 0, %s71
      %s86 = sphi 0, %s72
      %s90 = sphi 0, %s90
      %s92 = sphi 0, %s90
      %s93 = sphi 0, %s92
      %s107 = sphi 0, %s93
      %s111 = sphi 0, %s111
      %s113 = sphi 0, %s111
      %s114 = sphi 0, %s113
      %s128 = sphi 0, %s114
      %s132 = sphi 0, %s132
      %s134 = sphi 0, %s132
      %s135 = sphi 0, %s134
      %s149 = sphi 0, %s135
    $region4: #{tpu_custom_call.1} parent=1 // loop_header_branch
      %17 = sbr.rel (%p15) target = $region8
    $region5: #{tpu_custom_call.1} parent=1 // loop_body
      %s19 = ssub.s32 %s14, 1
      %s20 = ssub.s32 %s14, 2
      %s21 = sadd.s32 %s14, 1
      %s22 = ssub.s32 %s14, %s21
      %p23 = scmp.eq.s32.totalorder %s22, 0
      %s25 = sadd.s32 %s24, 1
      %s26 = scalar_select %p23, %s24, %s25
      %p29 = pneg %p23
      %p30 = scmp.eq.s32.totalorder %s14, 2
      %p31 = por %p29, %p30
      %p32 = scmp.ne.s32.totalorder %s24, %s27
      %p33 = scmp.eq.s32.totalorder %s14, 0
      %p34 = por %p32, %p33
      %p35 = scmp.ne.s32.totalorder %s24, %s27
      %p36 = scmp.eq.s32.totalorder %s19, 2
      %p37 = por %p35, %p36
      %p38 = scmp.ne.s32.totalorder %s27, %s28
      %p39 = scmp.eq.s32.totalorder %s19, 0
      %p40 = por %p38, %p39
      %p41 = scmp.ne.s32.totalorder %s27, %s28
      %p42 = scmp.eq.s32.totalorder %s20, 2
      %p43 = por %p41, %p42
      %p45 = scmp.ne.s32.totalorder %s28, %s44
      %p46 = scmp.eq.s32.totalorder %s20, 0
      %p47 = por %p45, %p46
      %s49 = sadd.s32 %s48, 1
      %p52 = scmp.eq.s32.totalorder %s14, 2
      %p53 = scmp.ne.s32.totalorder %s48, %s50
      %p54 = scmp.eq.s32.totalorder %s14, 0
      %p55 = por %p53, %p54
      %p56 = scmp.ne.s32.totalorder %s48, %s50
      %p57 = scmp.eq.s32.totalorder %s19, 2
      %p58 = por %p56, %p57
      %p59 = scmp.ne.s32.totalorder %s50, %s51
      %p60 = scmp.eq.s32.totalorder %s19, 0
      %p61 = por %p59, %p60
      %p62 = scmp.ne.s32.totalorder %s50, %s51
      %p63 = scmp.eq.s32.totalorder %s20, 2
      %p64 = por %p62, %p63
      %p66 = scmp.ne.s32.totalorder %s51, %s65
      %p67 = scmp.eq.s32.totalorder %s20, 0
      %p68 = por %p66, %p67
      %s70 = sadd.s32 %s69, 1
      %p73 = scmp.eq.s32.totalorder %s14, 2
      %p74 = scmp.ne.s32.totalorder %s69, %s71
      %p75 = scmp.eq.s32.totalorder %s14, 0
      %p76 = por %p74, %p75
      %p77 = scmp.ne.s32.totalorder %s69, %s71
      %p78 = scmp.eq.s32.totalorder %s19, 2
      %p79 = por %p77, %p78
      %p80 = scmp.ne.s32.totalorder %s71, %s72
      %p81 = scmp.eq.s32.totalorder %s19, 0
      %p82 = por %p80, %p81
      %p83 = scmp.ne.s32.totalorder %s71, %s72
      %p84 = scmp.eq.s32.totalorder %s20, 2
      %p85 = por %p83, %p84
      %p87 = scmp.ne.s32.totalorder %s72, %s86
      %p88 = scmp.eq.s32.totalorder %s20, 0
      %p89 = por %p87, %p88
      %s91 = sadd.s32 %s90, 1
      %p94 = scmp.eq.s32.totalorder %s14, 2
      %p95 = scmp.ne.s32.totalorder %s90, %s92
      %p96 = scmp.eq.s32.totalorder %s14, 0
      %p97 = por %p95, %p96
      %p98 = scmp.ne.s32.totalorder %s90, %s92
      %p99 = scmp.eq.s32.totalorder %s19, 2
      %p100 = por %p98, %p99
      %p101 = scmp.ne.s32.totalorder %s92, %s93
      %p102 = scmp.eq.s32.totalorder %s19, 0
      %p103 = por %p101, %p102
      %p104 = scmp.ne.s32.totalorder %s92, %s93
      %p105 = scmp.eq.s32.totalorder %s20, 2
      %p106 = por %p104, %p105
      %p108 = scmp.ne.s32.totalorder %s93, %s107
      %p109 = scmp.eq.s32.totalorder %s20, 0
      %p110 = por %p108, %p109
      %s112 = sadd.s32 %s111, 1
      %p115 = scmp.eq.s32.totalorder %s14, 2
      %p116 = scmp.ne.s32.totalorder %s111, %s113
      %p117 = scmp.eq.s32.totalorder %s14, 0
      %p118 = por %p116, %p117
      %p119 = scmp.ne.s32.totalorder %s111, %s113
      %p120 = scmp.eq.s32.totalorder %s19, 2
      %p121 = por %p119, %p120
      %p122 = scmp.ne.s32.totalorder %s113, %s114
      %p123 = scmp.eq.s32.totalorder %s19, 0
      %p124 = por %p122, %p123
      %p125 = scmp.ne.s32.totalorder %s113, %s114
      %p126 = scmp.eq.s32.totalorder %s20, 2
      %p127 = por %p125, %p126
      %p129 = scmp.ne.s32.totalorder %s114, %s128
      %p130 = scmp.eq.s32.totalorder %s20, 0
      %p131 = por %p129, %p130
      %s133 = sadd.s32 %s132, 1
      %p136 = scmp.eq.s32.totalorder %s14, 2
      %p137 = scmp.ne.s32.totalorder %s132, %s134
      %p138 = scmp.eq.s32.totalorder %s14, 0
      %p139 = por %p137, %p138
      %p140 = scmp.ne.s32.totalorder %s132, %s134
      %p141 = scmp.eq.s32.totalorder %s19, 2
      %p142 = por %p140, %p141
      %p143 = scmp.ne.s32.totalorder %s134, %s135
      %p144 = scmp.eq.s32.totalorder %s19, 0
      %p145 = por %p143, %p144
      %p146 = scmp.ne.s32.totalorder %s134, %s135
      %p147 = scmp.eq.s32.totalorder %s20, 2
      %p148 = por %p146, %p147
      %p150 = scmp.ne.s32.totalorder %s135, %s149
      %p151 = scmp.eq.s32.totalorder %s20, 0
      %p152 = por %p150, %p151
      %p153 = scmp.le.s32.totalorder 1, %s14
      %p154 = scmp.lt.s32.totalorder %s14, 4
      %p155 = pnand %p153, %p154
      %p156 = pneg %p155
      // Predicated region
      $region9: #{tpu_custom_call.1} parent=5 // pred_check
        _
      $region10: #{tpu_custom_call.1} parent=5 // pred_check_branch
        %158 = sbr.rel (%p155) target = $region12
      $region11: #{tpu_custom_call.1} parent=5 // pred_region
        %s159 = ssub.s32 %s14, 1
        // Predicated region
        $region13: #{tpu_custom_call.1} parent=11 // pred_check
          %p160 = pneg %p61
        $region14: #{tpu_custom_call.1} parent=11 // pred_check_branch
          %162 = sbr.rel (%p160) target = $region16
        $region15: #{tpu_custom_call.1} parent=11 // pred_region
          _
        $region16: #{tpu_custom_call.1} parent=11 // pred_fallthru
          _
        // Predicated region
        $region17: #{tpu_custom_call.1} parent=11 // pred_check
          %p163 = pneg %p82
        $region18: #{tpu_custom_call.1} parent=11 // pred_check_branch
          %165 = sbr.rel (%p163) target = $region20
        $region19: #{tpu_custom_call.1} parent=11 // pred_region
          _
        $region20: #{tpu_custom_call.1} parent=11 // pred_fallthru
          _
        // Predicated region
        $region21: #{tpu_custom_call.1} parent=11 // pred_check
          %p166 = pneg %p103
        $region22: #{tpu_custom_call.1} parent=11 // pred_check_branch
          %168 = sbr.rel (%p166) target = $region24
        $region23: #{tpu_custom_call.1} parent=11 // pred_region
          _
        $region24: #{tpu_custom_call.1} parent=11 // pred_fallthru
          _
      $region12: #{tpu_custom_call.1} parent=5 // pred_fallthru
        _
      %p169 = scmp.lt.s32.totalorder %s14, 3
      // Predicated region
      $region25: #{tpu_custom_call.1} parent=5 // pred_check
        %p170 = pneg %p169
      $region26: #{tpu_custom_call.1} parent=5 // pred_check_branch
        %172 = sbr.rel (%p170) target = $region28
      $region27: #{tpu_custom_call.1} parent=5 // pred_region
        // Predicated region
        $region29: #{tpu_custom_call.1} parent=27 // pred_check
          %p173 = pneg %p34
        $region30: #{tpu_custom_call.1} parent=27 // pred_check_branch
          %175 = sbr.rel (%p173) target = $region32
        $region31: #{tpu_custom_call.1} parent=27 // pred_region
          %p176 = scmp.lt.s32.totalorder %s14, 2
          %s177 = scalar_select %p176, %s14, 2
          %s178 = smul.addr %s177, 8
          %s179 = scalar_lea.vmem %s0, %s178
        $region32: #{tpu_custom_call.1} parent=27 // pred_fallthru
          _
      $region28: #{tpu_custom_call.1} parent=5 // pred_fallthru
        _
      %p180 = scmp.le.s32.totalorder 1, %s14
      %p181 = scmp.lt.s32.totalorder %s14, 4
      %p182 = pnand %p180, %p181
      %p183 = pneg %p182
      // Predicated region
      $region33: #{tpu_custom_call.1} parent=5 // pred_check
        _
      $region34: #{tpu_custom_call.1} parent=5 // pred_check_branch
        %185 = sbr.rel (%p182) target = $region36
      $region35: #{tpu_custom_call.1} parent=5 // pred_region
        %s186 = ssub.s32 %s14, 1
        %p187 = scmp.lt.s32.totalorder %s19, 2
        %s188 = scalar_select %p187, %s19, 2
        %s189 = smul.addr %s188, 8
        %s190 = scalar_lea.vmem %s0, %s189
        %p191 = pneg %p40
        %p192 = pneg %p37
        %p193 = pneg %p61
        %p194 = pneg %p58
        %p195 = pneg %p82
        %p196 = pneg %p79
        %p197 = pneg %p103
        %p198 = pneg %p100
        %p199 = pneg %p124
        %p200 = pneg %p121
        %p201 = pneg %p145
        %p202 = pneg %p142
        %p203 = scmp.lt.s32.totalorder %s19, 2
        %s204 = scalar_select %p203, %s19, 2
        %s205 = smul.addr %s204, 8
        %s206 = scalar_lea.vmem %s0, %s205
        %p207 = scmp.eq.s32.totalorder %s19, 0
        // Predicated region
        $region37: #{tpu_custom_call.1} parent=35 // pred_check
          %p208 = pneg %p207
        $region38: #{tpu_custom_call.1} parent=35 // pred_check_branch
          %210 = sbr.rel (%p208) target = $region40
        $region39: #{tpu_custom_call.1} parent=35 // pred_region
          %vm211 = vcmask 253952
          %212 = vst.msk [vmem:[#allocation2] sm:$0x1] %vm211, 0.0
          %213 = vst.msk [vmem:[#allocation3] sm:$0x1] %vm211, 0.0
        $region40: #{tpu_custom_call.1} parent=35 // pred_fallthru
          _
        %v214 = vld [vmem:[%s206] sm:$0xff]
        %v215 = vld [vmem:[%s1] sm:$0xff]
        %v216 = vld [vmem:[%s1 + $0x8] sm:$0xff]
        %vm217 = vcmask 130048
        %v219 = vsel %vm217, %v214, 0
        %221 = vmatprep.subr.mxu0 0.0
        %222 = vmatpush1.msra.mxu0 %v215
        %223 = vmatprep.subr.mxu0 0.0
        %224 = vmatpush1.msra.mxu0 %v216
        %225 = vmatprep.subr.mxu0 0.0
        %226 = vmatpush1.msra.mxu0 0.0
        %227 = vmatprep.subr.mxu0 0.0
        %228 = vmatpush1.msra.mxu0 0.0
        %229 = vmatprep.subr.mxu0 0.0
        %230 = vmatpush1.msra.mxu0 0.0
        %231 = vmatprep.subr.mxu0 0.0
        %232 = vmatpush1.msra.mxu0 0.0
        %233 = vmatprep.subr.mxu0 0.0
        %234 = vmatpush1.msra.mxu0 0.0
        %235 = vmatprep.subr.mxu0 0.0
        %236 = vmatpush1.msra.mxu0 0.0
        %237 = vmatprep.subr.mxu0 0.0
        %238 = vmatpush1.msra.mxu0 0.0
        %239 = vmatprep.subr.mxu0 0.0
        %240 = vmatpush1.msra.mxu0 0.0
        %241 = vmatprep.subr.mxu0 0.0
        %242 = vmatpush1.msra.mxu0 0.0
        %243 = vmatprep.subr.mxu0 0.0
        %244 = vmatpush1.msra.mxu0 0.0
        %245 = vmatprep.subr.mxu0 0.0
        %246 = vmatpush1.msra.mxu0 0.0
        %247 = vmatprep.subr.mxu0 0.0
        %248 = vmatpush1.msra.mxu0 0.0
        %249 = vmatprep.subr.mxu0 0.0
        %250 = vmatpush1.msra.mxu0 0.0
        %251 = vmatprep.subr.mxu0 0.0
        %252 = vmatpush1.msra.mxu0 0.0
        %253 = vmatprep.subr.mxu0 0.0
        %254 = vmatpush1.msra.mxu0 0.0
        %255 = vmatprep.subr.mxu0 0.0
        %256 = vmatpush1.msra.mxu0 0.0
        %257 = vmatprep.subr.mxu0 0.0
        %258 = vmatpush1.msra.mxu0 0.0
        %259 = vmatprep.subr.mxu0 0.0
        %260 = vmatpush1.msra.mxu0 0.0
        %261 = vmatprep.subr.mxu0 0.0
        %262 = vmatpush1.msra.mxu0 0.0
        %263 = vmatprep.subr.mxu0 0.0
        %264 = vmatpush1.msra.mxu0 0.0
        %265 = vmatprep.subr.mxu0 0.0
        %266 = vmatpush1.msra.mxu0 0.0
        %267 = vmatprep.subr.mxu0 0.0
        %268 = vmatpush1.msra.mxu0 0.0
        %269 = vmatprep.subr.mxu0 0.0
        %270 = vmatpush1.msra.mxu0 0.0
        %271 = vmatprep.subr.mxu0 0.0
        %272 = vmatpush1.msra.mxu0 0.0
        %273 = vmatprep.subr.mxu0 0.0
        %274 = vmatpush1.msra.mxu0 0.0
        %275 = vmatprep.subr.mxu0 0.0
        %276 = vmatpush1.msra.mxu0 0.0
        %277 = vmatprep.subr.mxu0 0.0
        %278 = vmatpush1.msra.mxu0 0.0
        %279 = vmatprep.subr.mxu0 0.0
        %280 = vmatpush1.msra.mxu0 0.0
        %281 = vmatprep.subr.mxu0 0.0
        %282 = vmatpush1.msra.mxu0 0.0
        %283 = vmatprep.subr.mxu0 0.0
        %284 = vmatpush1.msra.mxu0 0.0
        %285 = vmatprep.mubr.f32.mxu0 0.0
        %286 = vmatmul.mubr.f32.gmra.mrb[0].mxu0 %v219
        %v287 = vpop.f32.mrb[0].mxu0
        %v288 = vadd.f32 0.0, %v287
        %v289 = vpop.f32.mrb[0].mxu0
        %290 = vdwg.mxu0
        %v291 = vlaneseq
        %v292 = vshrl.u32 %v291, 7
        %s293 = smul.u32 %s19, 8
        %v294 = vstv %s293
        %v295 = vadd.s32 %v292, %v294
        %vm296 = vcmp.lt.s32.totalorder %v295, 20
        %v297 = vsel %vm296, %v288, 0.0
        %v298 = vld [vmem:[#allocation2] sm:$0x1]
        %vm299 = vcmask 261120
        %v300 = vsel %vm299, %v297, 0.0
        %v301 = vrot.slane %v300, 4
        %v302 = vadd.f32 %v300, %v301
        %v303 = vrot.slane %v302, 2
        %v304 = vadd.f32 %v302, %v303
        %v305 = vrot.slane %v304, 1
        %v306 = vadd.f32 %v304, %v305
        %v307 = vadd.f32 %v298, %v306
        %vm308 = vcmask 253952
        %309 = vst.msk [vmem:[#allocation2] sm:$0x1] %vm308, %v307
        %v310 = vld [vmem:[#allocation3] sm:$0x1]
        %v311 = vmul.f32 %v297, %v297
        %v312 = vsel %vm299, %v311, 0.0
        %v313 = vrot.slane %v312, 4
        %v314 = vadd.f32 %v312, %v313
        %v315 = vrot.slane %v314, 2
        %v316 = vadd.f32 %v314, %v315
        %v317 = vrot.slane %v316, 1
        %v318 = vadd.f32 %v316, %v317
        %v319 = vadd.f32 %v310, %v318
        %320 = vst.msk [vmem:[#allocation3] sm:$0x1] %vm308, %v319
        %p321 = scmp.eq.s32.totalorder %s19, 2
        // Predicated region
        $region41: #{tpu_custom_call.1} parent=35 // pred_check
          %p322 = pneg %p321
        $region42: #{tpu_custom_call.1} parent=35 // pred_check_branch
          %324 = sbr.rel (%p322) target = $region44
        $region43: #{tpu_custom_call.1} parent=35 // pred_region
          %v325 = vld [vmem:[#allocation2] sm:$0x1]
          %v326 = vmul.f32 %v325, 0.05
          %v327 = vld [vmem:[#allocation3] sm:$0x1]
          %v328 = vmul.f32 %v327, 0.05
          %v329 = vmul.f32 %v326, %v326
          %v330 = vsub.f32 %v328, %v329
          %v331 = vmax.f32 %v330, 0.0
          %v332 = vld [vmem:[%s2] sm:$0x1]
          %v333 = vadd.f32 %v331, 1e-05
          %v334 = vrsqrt.pop %v333
          %v335 = vmul.f32 %v332, %v334
          %336 = vst.msk [vmem:[#allocation4] sm:$0x1] %vm308, %v335
          %v337 = vld [vmem:[%s3] sm:$0x1]
          %v338 = vmul.f32 %v326, %v335
          %v339 = vsub.f32 %v337, %v338
          %340 = vst.msk [vmem:[#allocation6] sm:$0x1] %vm308, %v339
        $region44: #{tpu_custom_call.1} parent=35 // pred_fallthru
          _
        // Predicated region
        $region45: #{tpu_custom_call.1} parent=35 // pred_check
          %p341 = pneg %p121
        $region46: #{tpu_custom_call.1} parent=35 // pred_check_branch
          %343 = sbr.rel (%p341) target = $region48
        $region47: #{tpu_custom_call.1} parent=35 // pred_region
          %s345 = ssub.s32 16, 16
          %346 = vsyncadd [#allocation5], %s345
          %s348 = sshll.u32 [#allocation4], 4
          %s349 = int_to_ptr.vmem [resolvable:$true] %s348
          %351 = dma.vmem_to_hbm [thread:$0]  %s349, 16, %s4, [#allocation5]
        $region48: #{tpu_custom_call.1} parent=35 // pred_fallthru
          _
        // Predicated region
        $region49: #{tpu_custom_call.1} parent=35 // pred_check
          %p352 = pneg %p142
        $region50: #{tpu_custom_call.1} parent=35 // pred_check_branch
          %354 = sbr.rel (%p352) target = $region52
        $region51: #{tpu_custom_call.1} parent=35 // pred_region
          %s356 = ssub.s32 16, 16
          %357 = vsyncadd [#allocation7], %s356
          %s359 = sshll.u32 [#allocation6], 4
          %s360 = int_to_ptr.vmem [resolvable:$true] %s359
          %362 = dma.vmem_to_hbm [thread:$0]  %s360, 16, %s5, [#allocation7]
        $region52: #{tpu_custom_call.1} parent=35 // pred_fallthru
          _
        // Predicated region
        $region53: #{tpu_custom_call.1} parent=35 // pred_check
          %p363 = pneg %p121
        $region54: #{tpu_custom_call.1} parent=35 // pred_check_branch
          %365 = sbr.rel (%p363) target = $region56
        $region55: #{tpu_custom_call.1} parent=35 // pred_region
          %366 = dma.done [#allocation5], 16
        $region56: #{tpu_custom_call.1} parent=35 // pred_fallthru
          _
        // Predicated region
        $region57: #{tpu_custom_call.1} parent=35 // pred_check
          %p367 = pneg %p142
        $region58: #{tpu_custom_call.1} parent=35 // pred_check_branch
          %369 = sbr.rel (%p367) target = $region60
        $region59: #{tpu_custom_call.1} parent=35 // pred_region
          %370 = dma.done [#allocation7], 16
        $region60: #{tpu_custom_call.1} parent=35 // pred_fallthru
          _
      $region36: #{tpu_custom_call.1} parent=5 // pred_fallthru
        _
      %p371 = scmp.le.s32.totalorder 2, %s14
      // Predicated region
      $region61: #{tpu_custom_call.1} parent=5 // pred_check
        %p372 = pneg %p371
      $region62: #{tpu_custom_call.1} parent=5 // pred_check_branch
        %374 = sbr.rel (%p372) target = $region64
      $region63: #{tpu_custom_call.1} parent=5 // pred_region
        %s375 = ssub.s32 %s14, 2
      $region64: #{tpu_custom_call.1} parent=5 // pred_fallthru
        _
    $region6: #{tpu_custom_call.1} parent=1 // loop_footer
      %s18 = sadd.s32 1, %s14
    $region7: #{tpu_custom_call.1} parent=1 // loop_footer_branch
      %13 = sbr.rel target = $region3
    $region8: #{tpu_custom_call.1} parent=1 // loop_exit
      _
    %376 = vsyncpa [#allocation5], 1
    %s377 = scalar_lea.sflag [#allocation5], 1
    %378 = vsyncpa %s377, 1
    %379 = vsyncpa [#allocation7], 1

</llo_original>
